<compile_context>
chip_gen: v7x
topology: tpu7x:2x2x1
jax: 0.10.0
libtpu: 0.0.40
codegen_flags: <defaults>
</compile_context>

<pallas_src>
import jax
import jax.numpy as jnp
import numpy as np
from jax.experimental import pallas as pl
from jax.experimental.pallas import tpu as pltpu


def _round_up(x, m):
    return (x + m - 1) // m * m


def _decode_conv_kernel(bias_ref, z_ref, w_ref, o_ref):
    # grid = (batch n [parallel], reduction tile k [arbitrary, innermost])
    k = pl.program_id(1)

    @pl.when(k == 0)
    def _():
        # Output block stays resident in VMEM across the reduction axis;
        # initialize it with the bias (accumulate directly into o_ref).
        o_ref[...] = jnp.zeros_like(o_ref) + bias_ref[0]

    # (U, tk) x (tk, hop_pad) -> (U, hop_pad) on the MXU, f32 accumulation.
    y = jnp.dot(z_ref[0], w_ref[...], preferred_element_type=jnp.float32)
    o_ref[...] += y[None, :, :]


def prepare_decode_weight(weight, *, stride, lane=128):
    """(C, K) ConvTranspose1d weight -> compact banded-GEMM weight (rC_pad, hop_pad) bf16.

    Depends only on the weight and static shapes; hoist / cache per weight update.
    Row layout: row s*C + c, column j holds W[c, s*stride + j] (zero-padded past K).
    """
    C, K = weight.shape
    r = -(-K // stride)                      # ceil(K / stride)
    Kp = r * stride
    hop_pad = _round_up(stride, lane)
    rC = r * C
    rC_pad = _round_up(rC, lane)
    w_pad = jnp.pad(weight, ((0, 0), (0, Kp - K)))                 # (C, Kp)
    w_re = w_pad.reshape(C, r, stride).transpose(1, 0, 2)          # (r, C, hop)
    w_re = w_re.reshape(rC, stride)                                # row = s*C + c
    w_re = jnp.pad(w_re, ((0, rC_pad - rC), (0, hop_pad - stride)))
    return w_re.astype(jnp.bfloat16)                               # (rC_pad, hop_pad)


def decode_conv(z, weight, bias, *, stride, padding, tk=256):
    """ConvTranspose1d(C -> 1, kernel K, stride, padding), then squeeze channel dim.

    z:      (N, C, T) float32
    weight: (C, K)    float32   (ConvTranspose1d weight (C, 1, K) with out-ch squeezed)
    bias:   (1,)      float32
    returns (N, L_out) float32 with L_out = (T - 1) * stride - 2 * padding + K
    """
    N, C, T = z.shape
    K = weight.shape[1]
    L_out = (T - 1) * stride - 2 * padding + K

    r = -(-K // stride)                      # ceil(K / stride)
    U = T + r - 1
    rC = r * C
    rC_pad = _round_up(rC, 128)
    hop_pad = _round_up(stride, 128)

    w_re = prepare_decode_weight(weight, stride=stride)            # (rC_pad, hop_pad) bf16

    # z (N, C, T) -> shift-stacked bf16 operand (N, U, rC_pad):
    #   z_big[n, u, s*C + c] = z[n, c, u - s]   (zero outside [0, T))
    zt = jnp.transpose(z, (0, 2, 1)).astype(jnp.bfloat16)          # (N, T, C)
    zt_p = jnp.pad(zt, ((0, 0), (r - 1, r - 1), (0, 0)))           # (N, T + 2(r-1), C)
    shifted = [zt_p[:, r - 1 - s: r - 1 - s + U, :] for s in range(r)]
    z_big = jnp.concatenate(shifted, axis=2)                       # (N, U, r*C)
    z_big = jnp.pad(z_big, ((0, 0), (0, 0), (0, rC_pad - rC)))     # (N, U, rC_pad)

    tk = min(tk, rC_pad)
    if rC_pad % tk != 0:
        tk = 128                               # rC_pad is always a multiple of 128
    nk = rC_pad // tk

    full = pl.pallas_call(
        _decode_conv_kernel,
        out_shape=jax.ShapeDtypeStruct((N, U, hop_pad), jnp.float32),
        grid_spec=pltpu.PrefetchScalarGridSpec(
            num_scalar_prefetch=0,
            grid=(N, nk),
            in_specs=[
                pl.BlockSpec(memory_space=pltpu.MemorySpace.SMEM),            # bias (1,)
                pl.BlockSpec((1, U, tk), lambda n, k: (n, 0, k)),             # z_big tile
                pl.BlockSpec((tk, hop_pad), lambda n, k: (k, 0)),             # w_re tile
            ],
            out_specs=pl.BlockSpec((1, U, hop_pad), lambda n, k: (n, 0, 0)),
        ),
        compiler_params=pltpu.CompilerParams(
            dimension_semantics=("parallel", "arbitrary")),
    )(bias, z_big, w_re)

    # Layout plumbing only: drop the lane padding, flatten the (U, hop) view into the
    # full-length transposed-conv output, crop the ConvTranspose1d `padding`.
    out_full = full[:, :, :stride].reshape(N, U * stride)
    return out_full[:, padding: padding + L_out]


if __name__ == "__main__":
    # Small config consistent with EmbeddingConv's constructor arithmetic.
    wave_length, window_size, hop_size, num_features = 256, 32, 8, 16
    T = wave_length // hop_size                                           # 32
    padding = ((T - 1) * hop_size + window_size - wave_length + 1) // 2   # 12
    L_out = (T - 1) * hop_size - 2 * padding + window_size                # 256
    assert L_out == wave_length
    N = 2

    key = jax.random.PRNGKey(0)
    kz, kw, kb = jax.random.split(key, 3)
    z = jax.random.normal(kz, (N, num_features, T), dtype=jnp.float32)
    # ConvTranspose1d params: weight (in_ch=C, out_ch=1, K) -> stored as (C, K); bias (1,).
    bound = 1.0 / float(np.sqrt(num_features * window_size))
    weight = jax.random.uniform(kw, (num_features, window_size), jnp.float32, -bound, bound)
    bias = jax.random.uniform(kb, (1,), jnp.float32, -bound, bound)

    out = decode_conv(z, weight, bias, stride=hop_size, padding=padding)
    out = jax.block_until_ready(out)
    assert out.shape == (N, wave_length)

    # Pure-numpy reference: ConvTranspose1d as overlap-add, then crop padding.
    def overlap_add_ref(zz, ww, bb):
        L_full = (T - 1) * hop_size + window_size
        ref = np.zeros((N, L_full), dtype=np.float64)
        for t in range(T):
            ref[:, t * hop_size: t * hop_size + window_size] += zz[:, :, t] @ ww
        return ref[:, padding: padding + L_out] + bb[0]

    zn = np.asarray(z, dtype=np.float64)
    wn = np.asarray(weight, dtype=np.float64)
    bn = np.asarray(bias, dtype=np.float64)

    # (1) Against the exact-precision op: loose tolerance because the kernel
    #     intentionally feeds the MXU bf16 operands (with f32 accumulation).
    np.testing.assert_allclose(np.asarray(out), overlap_add_ref(zn, wn, bn),
                               rtol=2e-2, atol=2e-2)

    # (2) Against the same op with bf16-quantized operands: tight tolerance,
    #     isolating the intentional bf16 cast from any kernel bug.
    zq = np.asarray(z.astype(jnp.bfloat16).astype(jnp.float32), dtype=np.float64)
    wq = np.asarray(weight.astype(jnp.bfloat16).astype(jnp.float32), dtype=np.float64)
    np.testing.assert_allclose(np.asarray(out), overlap_add_ref(zq, wq, bn),
                               rtol=1e-4, atol=1e-4)

    print("KERNEL_OK")
</pallas_src>

<mosaic_0001>
module attributes {stable_mosaic.version = 11 : i64} {
  func.func @_decode_conv_kernel(%arg0: i32, %arg1: i32, %arg2: memref<1xf32, #tpu.memory_space<smem>>, %arg3: memref<1x35x128xbf16, #tpu.memory_space<vmem>>, %arg4: memref<128x128xbf16, #tpu.memory_space<vmem>>, %arg5: memref<1x35x128xf32, #tpu.memory_space<vmem>>) attributes {dimension_semantics = [#tpu.dimension_semantics<parallel>, #tpu.dimension_semantics<arbitrary>], iteration_bounds = array<i64: 2, 1>, scalar_prefetch = 0 : i64, scratch_operands = 0 : i64, tpu.core_type = #tpu.core_type<tc>, window_params = [{transform_indices = @transform_0, window_bounds = array<i64: 1>}, {transform_indices = @transform_1, window_bounds = array<i64: 1, 35, 128>}, {transform_indices = @transform_2, window_bounds = array<i64: 128, 128>}, {transform_indices = @transform_3, window_bounds = array<i64: 1, 35, 128>}]} {
    %c0_i32 = arith.constant 0 : i32
    %0 = arith.cmpi eq, %arg1, %c0_i32 : i32
    %1 = arith.extui %0 : i1 to i32
    %c0_i32_0 = arith.constant 0 : i32
    %2 = arith.cmpi ne, %1, %c0_i32_0 : i32
    scf.if %2 {
      %cst_11 = arith.constant 0.000000e+00 : f32
      %11 = vector.broadcast %cst_11 : f32 to vector<1x35x128xf32>
      %c0_12 = arith.constant 0 : index
      %12 = memref.load %arg2[%c0_12] : memref<1xf32, #tpu.memory_space<smem>>
      %13 = vector.broadcast %12 : f32 to vector<1x35x128xf32>
      %14 = arith.addf %11, %13 : vector<1x35x128xf32>
      %c0_13 = arith.constant 0 : index
      %c0_14 = arith.constant 0 : index
      %c0_15 = arith.constant 0 : index
      %15 = vector.load %arg5[%c0_13, %c0_14, %c0_15] : memref<1x35x128xf32, #tpu.memory_space<vmem>>, vector<1x35x128xf32>
      tpu.vector_store %arg5[%c0_13, %c0_14, %c0_15], %14 {strides = array<i32>} : memref<1x35x128xf32, #tpu.memory_space<vmem>>, vector<1x35x128xf32>,
    } else {
    }
    %c0 = arith.constant 0 : index
    %c0_1 = arith.constant 0 : index
    %c0_2 = arith.constant 0 : index
    %3 = vector.load %arg3[%c0, %c0_1, %c0_2] : memref<1x35x128xbf16, #tpu.memory_space<vmem>>, vector<1x35x128xbf16>
    %4 = vector.shape_cast %3 : vector<1x35x128xbf16> to vector<35x128xbf16>
    %c0_3 = arith.constant 0 : index
    %c0_4 = arith.constant 0 : index
    %5 = vector.load %arg4[%c0_3, %c0_4] : memref<128x128xbf16, #tpu.memory_space<vmem>>, vector<128x128xbf16>
    %cst = arith.constant dense<0.000000e+00> : vector<35x128xf32>
    %6 = tpu.matmul %4, %5, %cst {dimension_numbers = #tpu.dot_dimension_numbers<[1], [0], [0], [1], [0, 0, 1, 1], [], []>} : vector<35x128xbf16>, vector<128x128xbf16>, vector<35x128xf32> -> vector<35x128xf32>
    %c0_5 = arith.constant 0 : index
    %c0_6 = arith.constant 0 : index
    %c0_7 = arith.constant 0 : index
    %7 = vector.load %arg5[%c0_5, %c0_6, %c0_7] : memref<1x35x128xf32, #tpu.memory_space<vmem>>, vector<1x35x128xf32>
    %8 = vector.shape_cast %6 : vector<35x128xf32> to vector<1x35x128xf32>
    %9 = arith.addf %7, %8 : vector<1x35x128xf32>
    %c0_8 = arith.constant 0 : index
    %c0_9 = arith.constant 0 : index
    %c0_10 = arith.constant 0 : index
    %10 = vector.load %arg5[%c0_8, %c0_9, %c0_10] : memref<1x35x128xf32, #tpu.memory_space<vmem>>, vector<1x35x128xf32>
    tpu.vector_store %arg5[%c0_8, %c0_9, %c0_10], %9 {strides = array<i32>} : memref<1x35x128xf32, #tpu.memory_space<vmem>>, vector<1x35x128xf32>,
    return
  }
  func.func @transform_0(%arg0: i32, %arg1: i32) -> i32 {
    %c0_i32 = arith.constant 0 : i32
    %c0_i32_0 = arith.constant 0 : i32
    return %c0_i32 : i32
  }
  func.func @transform_1(%arg0: i32, %arg1: i32) -> (i32, i32, i32) {
    %c0_i32 = arith.constant 0 : i32
    %c0_i32_0 = arith.constant 0 : i32
    return %arg0, %c0_i32, %arg1 : i32, i32, i32
  }
  func.func @transform_2(%arg0: i32, %arg1: i32) -> (i32, i32) {
    %c0_i32 = arith.constant 0 : i32
    %c0_i32_0 = arith.constant 0 : i32
    return %arg1, %c0_i32 : i32, i32
  }
  func.func @transform_3(%arg0: i32, %arg1: i32) -> (i32, i32, i32) {
    %c0_i32 = arith.constant 0 : i32
    %c0_i32_0 = arith.constant 0 : i32
    %c0_i32_1 = arith.constant 0 : i32
    return %arg0, %c0_i32, %c0_i32_0 : i32, i32, i32
  }
}

</mosaic_0001>

<llo_original>
// kernel: tpu_custom_call.1
$region0: #{tpu_custom_call.1}
  #allocation0 [shape = 'u32[]', space=smem, size = 0x4, offset = 0x4, fixed_abs, tag = 'smem constant byte address 0x4 - core index']
  #allocation1 [shape = 'u32[144,128]{1,0:T(1,128)}', space=vmem, size = 0x12000, scoped, tag = 'internal scratch']
  #allocation2 [shape = 'f32[1]{0:T(128)S(6)}', space=smem, size = 0x200, scoped, tag = 'scoped memory for tpu_custom_call.1']
  %s0 = inlined_call_operand.<no memory space> [shape: f32[1], index: 0, kind: input, shape index: {}]
  %s1 = inlined_call_operand.vmem [shape: bf16[2,35,128], index: 1, kind: input, shape index: {}]
  %s2 = inlined_call_operand.vmem [shape: bf16[128,128], index: 2, kind: input, shape index: {}]
  %s3 = inlined_call_operand.vmem [shape: f32[2,35,128], index: 3, kind: output, shape index: {}]
  %s4 = sld [smem:[#allocation0]]
  $region49: #{tpu_custom_call.1} parent=0
    _
  %s6 = ssub.s32 1, %s4
  %s7 = scalar_select 0, %s6, %s4
  %8 = sst [smem:[#allocation2]] %s0
  loop: start=0, step=1, limit=4
  $region2: #{tpu_custom_call.1} parent=0 // loop_pre_header
    _
  $region3: #{tpu_custom_call.1} parent=0 // loop_header
    %s10 = sphi 0, %s14
    %p11 = scmp.ge.s32.totalorder %s10, 4
    %s17 = sphi 0, %s29
    %s18 = sphi 0, %s25
    %s19 = sphi 0, %s17
    %s20 = sphi 0, %s18
    %s21 = sphi 0, %s19
    %s22 = sphi 0, %s20
    %s30 = sphi 0, %s30
    %s32 = sphi 0, %s30
    %s33 = sphi 0, %s32
    %s47 = sphi 0, %s33
    %s55 = sphi 0, %s57
    %s58 = sphi 0, %s55
    %s59 = sphi 0, %s58
    %s75 = sphi 0, %s59
    %s81 = sphi 0, %s83
    %s84 = sphi 0, %s81
    %s85 = sphi 0, %s84
    %s101 = sphi 0, %s85
    %s107 = sphi 0, %s109
    %s110 = sphi 0, %s107
    %s111 = sphi 0, %s110
    %s127 = sphi 0, %s111
  $region4: #{tpu_custom_call.1} parent=0 // loop_header_branch
    %13 = sbr.rel (%p11) target = $region8
  $region5: #{tpu_custom_call.1} parent=0 // loop_body
    %s15 = ssub.s32 %s10, 1
    %s16 = ssub.s32 %s10, 2
    %s23 = sadd.s32 1, %s18
    %p24 = scmp.ge.s32.totalorder %s23, 1
    %s25 = scalar_select %p24, 0, %s23
    %s26 = sadd.s32 1, %s17
    %s27 = scalar_select %p24, %s26, %s17
    %p28 = scmp.ge.s32.totalorder %s27, 2
    %s29 = scalar_select %p28, 0, %s27
    %s31 = sadd.s32 %s30, 1
    %p34 = scmp.eq.s32.totalorder %s10, 1
    %p35 = scmp.ne.s32.totalorder %s30, %s32
    %p36 = scmp.eq.s32.totalorder %s10, 0
    %p37 = por %p35, %p36
    %p38 = scmp.ne.s32.totalorder %s30, %s32
    %p39 = scmp.eq.s32.totalorder %s15, 1
    %p40 = por %p38, %p39
    %p41 = scmp.ne.s32.totalorder %s32, %s33
    %p42 = scmp.eq.s32.totalorder %s15, 0
    %p43 = por %p41, %p42
    %p44 = scmp.ne.s32.totalorder %s32, %s33
    %p45 = scmp.eq.s32.totalorder %s16, 1
    %p46 = por %p44, %p45
    %p48 = scmp.ne.s32.totalorder %s33, %s47
    %p49 = scmp.eq.s32.totalorder %s16, 0
    %p50 = por %p48, %p49
    %s51 = ssub.s32 %s17, %s29
    %s52 = ssub.s32 %s18, %s25
    %s53 = sor.u32 %s51, %s52
    %p54 = scmp.eq.s32.totalorder %s53, 0
    %s56 = sadd.s32 %s55, 1
    %s57 = scalar_select %p54, %s55, %s56
    %p60 = pneg %p54
    %p61 = scmp.eq.s32.totalorder %s10, 1
    %p62 = por %p60, %p61
    %p63 = scmp.ne.s32.totalorder %s55, %s58
    %p64 = scmp.eq.s32.totalorder %s10, 0
    %p65 = por %p63, %p64
    %p66 = scmp.ne.s32.totalorder %s55, %s58
    %p67 = scmp.eq.s32.totalorder %s15, 1
    %p68 = por %p66, %p67
    %p69 = scmp.ne.s32.totalorder %s58, %s59
    %p70 = scmp.eq.s32.totalorder %s15, 0
    %p71 = por %p69, %p70
    %p72 = scmp.ne.s32.totalorder %s58, %s59
    %p73 = scmp.eq.s32.totalorder %s16, 1
    %p74 = por %p72, %p73
    %p76 = scmp.ne.s32.totalorder %s59, %s75
    %p77 = scmp.eq.s32.totalorder %s16, 0
    %p78 = por %p76, %p77
    %s79 = ssub.s32 %s18, %s25
    %p80 = scmp.eq.s32.totalorder %s79, 0
    %s82 = sadd.s32 %s81, 1
    %s83 = scalar_select %p80, %s81, %s82
    %p86 = pneg %p80
    %p87 = scmp.eq.s32.totalorder %s10, 1
    %p88 = por %p86, %p87
    %p89 = scmp.ne.s32.totalorder %s81, %s84
    %p90 = scmp.eq.s32.totalorder %s10, 0
    %p91 = por %p89, %p90
    %p92 = scmp.ne.s32.totalorder %s81, %s84
    %p93 = scmp.eq.s32.totalorder %s15, 1
    %p94 = por %p92, %p93
    %p95 = scmp.ne.s32.totalorder %s84, %s85
    %p96 = scmp.eq.s32.totalorder %s15, 0
    %p97 = por %p95, %p96
    %p98 = scmp.ne.s32.totalorder %s84, %s85
    %p99 = scmp.eq.s32.totalorder %s16, 1
    %p100 = por %p98, %p99
    %p102 = scmp.ne.s32.totalorder %s85, %s101
    %p103 = scmp.eq.s32.totalorder %s16, 0
    %p104 = por %p102, %p103
    %s105 = ssub.s32 %s17, %s29
    %p106 = scmp.eq.s32.totalorder %s105, 0
    %s108 = sadd.s32 %s107, 1
    %s109 = scalar_select %p106, %s107, %s108
    %p112 = pneg %p106
    %p113 = scmp.eq.s32.totalorder %s10, 1
    %p114 = por %p112, %p113
    %p115 = scmp.ne.s32.totalorder %s107, %s110
    %p116 = scmp.eq.s32.totalorder %s10, 0
    %p117 = por %p115, %p116
    %p118 = scmp.ne.s32.totalorder %s107, %s110
    %p119 = scmp.eq.s32.totalorder %s15, 1
    %p120 = por %p118, %p119
    %p121 = scmp.ne.s32.totalorder %s110, %s111
    %p122 = scmp.eq.s32.totalorder %s15, 0
    %p123 = por %p121, %p122
    %p124 = scmp.ne.s32.totalorder %s110, %s111
    %p125 = scmp.eq.s32.totalorder %s16, 1
    %p126 = por %p124, %p125
    %p128 = scmp.ne.s32.totalorder %s111, %s127
    %p129 = scmp.eq.s32.totalorder %s16, 0
    %p130 = por %p128, %p129
    %p131 = scmp.le.s32.totalorder 1, %s10
    %p132 = scmp.lt.s32.totalorder %s10, 3
    %p133 = pnand %p131, %p132
    %p134 = pneg %p133
    // Predicated region
    $region9: #{tpu_custom_call.1} parent=5 // pred_check
      _
    $region10: #{tpu_custom_call.1} parent=5 // pred_check_branch
      %136 = sbr.rel (%p133) target = $region12
    $region11: #{tpu_custom_call.1} parent=5 // pred_region
      %s137 = ssub.s32 %s10, 1
      // Predicated region
      $region13: #{tpu_custom_call.1} parent=11 // pred_check
        %p138 = pneg %p43
      $region14: #{tpu_custom_call.1} parent=11 // pred_check_branch
        %140 = sbr.rel (%p138) target = $region16
      $region15: #{tpu_custom_call.1} parent=11 // pred_region
        _
      $region16: #{tpu_custom_call.1} parent=11 // pred_fallthru
        _
      // Predicated region
      $region17: #{tpu_custom_call.1} parent=11 // pred_check
        %p141 = pneg %p97
      $region18: #{tpu_custom_call.1} parent=11 // pred_check_branch
        %143 = sbr.rel (%p141) target = $region20
      $region19: #{tpu_custom_call.1} parent=11 // pred_region
        %s144 = smul.u32 16, %s20
        %p145 = scmp.lt.s32.totalorder %s144, 15
        %s146 = scalar_select %p145, %s144, 15
        %s147 = smul.addr %s146, 4
        %s148 = scalar_lea.vmem %s2, %s147
        %s149 = smul.u32 16, %s20
      $region20: #{tpu_custom_call.1} parent=11 // pred_fallthru
        _
    $region12: #{tpu_custom_call.1} parent=5 // pred_fallthru
      _
    %p150 = scmp.lt.s32.totalorder %s10, 2
    // Predicated region
    $region21: #{tpu_custom_call.1} parent=5 // pred_check
      %p151 = pneg %p150
    $region22: #{tpu_custom_call.1} parent=5 // pred_check_branch
      %153 = sbr.rel (%p151) target = $region24
    $region23: #{tpu_custom_call.1} parent=5 // pred_region
      // Predicated region
      $region25: #{tpu_custom_call.1} parent=23 // pred_check
        %p154 = pneg %p65
      $region26: #{tpu_custom_call.1} parent=23 // pred_check_branch
        %156 = sbr.rel (%p154) target = $region28
      $region27: #{tpu_custom_call.1} parent=23 // pred_region
        %p157 = scmp.lt.s32.totalorder %s17, 1
        %s158 = scalar_select %p157, %s17, 1
        %p159 = scmp.lt.s32.totalorder %s18, 0
        %s160 = scalar_select %p159, %s18, 0
        %s161 = smul.addr %s158, 5
        %s162 = sadd.s32 %s160, %s161
        %s163 = smul.addr %s162, 4
        %s164 = scalar_lea.vmem %s1, %s163
      $region28: #{tpu_custom_call.1} parent=23 // pred_fallthru
        _
    $region24: #{tpu_custom_call.1} parent=5 // pred_fallthru
      _
    %p165 = scmp.le.s32.totalorder 1, %s10
    %p166 = scmp.lt.s32.totalorder %s10, 3
    %p167 = pnand %p165, %p166
    %p168 = pneg %p167
    // Predicated region
    $region29: #{tpu_custom_call.1} parent=5 // pred_check
      _
    $region30: #{tpu_custom_call.1} parent=5 // pred_check_branch
      %170 = sbr.rel (%p167) target = $region32
    $region31: #{tpu_custom_call.1} parent=5 // pred_region
      %s171 = ssub.s32 %s10, 1
      %p172 = pneg %p43
      %p173 = pneg %p40
      %p174 = scmp.lt.s32.totalorder %s19, 1
      %s175 = scalar_select %p174, %s19, 1
      %p176 = scmp.lt.s32.totalorder %s20, 0
      %s177 = scalar_select %p176, %s20, 0
      %s178 = smul.addr %s175, 5
      %s179 = sadd.s32 %s177, %s178
      %s180 = smul.addr %s179, 4
      %s181 = scalar_lea.vmem %s1, %s180
      %p182 = pneg %p71
      %p183 = pneg %p68
      %s184 = smul.u32 16, %s20
      %p185 = scmp.lt.s32.totalorder %s184, 15
      %s186 = scalar_select %p185, %s184, 15
      %s187 = smul.addr %s186, 4
      %s188 = scalar_lea.vmem %s2, %s187
      %p189 = pneg %p97
      %p190 = pneg %p94
      %p191 = pneg %p123
      %p192 = pneg %p120
      %p193 = scmp.lt.s32.totalorder %s19, 1
      %s194 = scalar_select %p193, %s19, 1
      %s195 = smul.addr %s194, 5
      %s196 = smul.addr %s195, 8
      %s197 = scalar_lea.vmem %s3, %s196
      %p198 = scmp.lt.s32.totalorder %s19, 1
      %s199 = scalar_select %p198, %s19, 1
      %p200 = scmp.lt.s32.totalorder %s20, 0
      %s201 = scalar_select %p200, %s20, 0
      %s202 = smul.addr %s199, 5
      %s203 = sadd.s32 %s201, %s202
      %s204 = smul.addr %s203, 4
      %s205 = scalar_lea.vmem %s1, %s204
      %s206 = smul.u32 16, %s20
      %p207 = scmp.lt.s32.totalorder %s206, 15
      %s208 = scalar_select %p207, %s206, 15
      %s209 = smul.addr %s208, 4
      %s210 = scalar_lea.vmem %s2, %s209
      %s211 = smul.u32 16, %s20
      %p212 = scmp.lt.s32.totalorder %s19, 1
      %s213 = scalar_select %p212, %s19, 1
      %s214 = smul.addr %s213, 5
      %s215 = smul.addr %s214, 8
      %s216 = scalar_lea.vmem %s3, %s215
      %p218 = scmp.eq.s32.totalorder %s20, 0
      // Predicated region
      $region33: #{tpu_custom_call.1} parent=31 // pred_check
        %p219 = pneg %p218
      $region34: #{tpu_custom_call.1} parent=31 // pred_check_branch
        %221 = sbr.rel (%p219) target = $region36
      $region35: #{tpu_custom_call.1} parent=31 // pred_region
        %s222 = sld [smem:[#allocation2]]
        %v223 = vstv %s222
        %v224 = vadd.f32 %v223, 0.0
        %225 = vst [vmem:[%s216] sm:$0xff] %v224
        %226 = vst [vmem:[%s216 + $0x8] sm:$0xff] %v224
        %227 = vst [vmem:[%s216 + $0x10] sm:$0xff] %v224
        %228 = vst [vmem:[%s216 + $0x18] sm:$0xff] %v224
        %229 = vst [vmem:[%s216 + $0x20] sm:$0x7] %v224
      $region36: #{tpu_custom_call.1} parent=31 // pred_fallthru
        _
      %v230 = vld [vmem:[%s205] sm:$0xf]
      %v231 = vld [vmem:[%s205 + $0x4] sm:$0xf]
      %v232 = vld [vmem:[%s205 + $0x8] sm:$0xf]
      %v233 = vld [vmem:[%s205 + $0xc] sm:$0xf]
      %v234 = vld [vmem:[%s205 + $0x10] sm:$0x3]
      %v235 = vld [vmem:[%s210] sm:$0xf]
      %v236 = vld [vmem:[%s210 + $0x4] sm:$0xf]
      %v237 = vld [vmem:[%s210 + $0x8] sm:$0xf]
      %v238 = vld [vmem:[%s210 + $0xc] sm:$0xf]
      %v239 = vld [vmem:[%s210 + $0x10] sm:$0xf]
      %v240 = vld [vmem:[%s210 + $0x14] sm:$0xf]
      %v241 = vld [vmem:[%s210 + $0x18] sm:$0xf]
      %v242 = vld [vmem:[%s210 + $0x1c] sm:$0xf]
      %v243 = vld [vmem:[%s210 + $0x20] sm:$0xf]
      %v244 = vld [vmem:[%s210 + $0x24] sm:$0xf]
      %v245 = vld [vmem:[%s210 + $0x28] sm:$0xf]
      %v246 = vld [vmem:[%s210 + $0x2c] sm:$0xf]
      %v247 = vld [vmem:[%s210 + $0x30] sm:$0xf]
      %v248 = vld [vmem:[%s210 + $0x34] sm:$0xf]
      %v249 = vld [vmem:[%s210 + $0x38] sm:$0xf]
      %v250 = vld [vmem:[%s210 + $0x3c] sm:$0xf]
      %v256 = vunpack.c.l.b16 %v230
      %v257 = vunpack.c.l.b16 %v231
      %v258 = vunpack.c.l.b16 %v232
      %v259 = vunpack.c.l.b16 %v233
      %v260 = vunpack.c.l.b16 %v234
      %v261 = vpack.c.b16 %v257, %v256
      %v262 = vpack.c.b16 %v259, %v258
      %v263 = vpack.c.b16 %v260, %v260
      %v283 = vunpack.c.l.b16 %v235
      %v284 = vunpack.c.l.b16 %v236
      %v285 = vunpack.c.l.b16 %v237
      %v286 = vunpack.c.l.b16 %v238
      %v287 = vunpack.c.l.b16 %v239
      %v288 = vunpack.c.l.b16 %v240
      %v289 = vunpack.c.l.b16 %v241
      %v290 = vunpack.c.l.b16 %v242
      %v291 = vunpack.c.l.b16 %v243
      %v292 = vunpack.c.l.b16 %v244
      %v293 = vunpack.c.l.b16 %v245
      %v294 = vunpack.c.l.b16 %v246
      %v295 = vunpack.c.l.b16 %v247
      %v296 = vunpack.c.l.b16 %v248
      %v297 = vunpack.c.l.b16 %v249
      %v298 = vunpack.c.l.b16 %v250
      %v299 = vpack.c.b16 %v284, %v283
      %v300 = vpack.c.b16 %v286, %v285
      %v301 = vpack.c.b16 %v288, %v287
      %v302 = vpack.c.b16 %v290, %v289
      %v303 = vpack.c.b16 %v292, %v291
      %v304 = vpack.c.b16 %v294, %v293
      %v305 = vpack.c.b16 %v296, %v295
      %v306 = vpack.c.b16 %v298, %v297
      %315 = vmatprep.subr.bf16.mxu0 0
      %316 = vmatpush1.bf16.msra.mxu0 %v299
      %317 = vmatprep.subr.bf16.mxu0 0
      %318 = vmatpush1.bf16.msra.mxu0 %v300
      %319 = vmatprep.subr.bf16.mxu0 0
      %320 = vmatpush1.bf16.msra.mxu0 %v301
      %321 = vmatprep.subr.bf16.mxu0 0
      %322 = vmatpush1.bf16.msra.mxu0 %v302
      %323 = vmatprep.subr.bf16.mxu0 0
      %324 = vmatpush1.bf16.msra.mxu0 %v303
      %325 = vmatprep.subr.bf16.mxu0 0
      %326 = vmatpush1.bf16.msra.mxu0 %v304
      %327 = vmatprep.subr.bf16.mxu0 0
      %328 = vmatpush1.bf16.msra.mxu0 %v305
      %329 = vmatprep.subr.bf16.mxu0 0
      %330 = vmatpush1.bf16.msra.mxu0 %v306
      %331 = vmatprep.subr.bf16.mxu0 0
      %332 = vmatpush1.bf16.msra.mxu0 0
      %333 = vmatprep.subr.bf16.mxu0 0
      %334 = vmatpush1.bf16.msra.mxu0 0
      %335 = vmatprep.subr.bf16.mxu0 0
      %336 = vmatpush1.bf16.msra.mxu0 0
      %337 = vmatprep.subr.bf16.mxu0 0
      %338 = vmatpush1.bf16.msra.mxu0 0
      %339 = vmatprep.subr.bf16.mxu0 0
      %340 = vmatpush1.bf16.msra.mxu0 0
      %341 = vmatprep.subr.bf16.mxu0 0
      %342 = vmatpush1.bf16.msra.mxu0 0
      %343 = vmatprep.subr.bf16.mxu0 0
      %344 = vmatpush1.bf16.msra.mxu0 0
      %345 = vmatprep.subr.bf16.mxu0 0
      %346 = vmatpush1.bf16.msra.mxu0 0
      %347 = vmatprep.mubr.bf16.mxu0 0
      %348 = vmatmul.mubr.bf16.gmra.mrb[0].mxu0 %v261
      %v349 = vpop.f32.mrb[0].mxu0
      %v350 = vadd.f32 0.0, %v349
      %v351 = vpop.f32.mrb[0].mxu0
      %v352 = vpop.f32.mrb[0].mxu0
      %v353 = vadd.f32 0.0, %v352
      %v354 = vpop.f32.mrb[0].mxu0
      %355 = vmatprep.mubr.bf16.mxu0 0
      %356 = vmatmul.mubr.bf16.gmra.mrb[0].mxu0 %v262
      %v357 = vpop.f32.mrb[0].mxu0
      %v358 = vadd.f32 0.0, %v357
      %v359 = vpop.f32.mrb[0].mxu0
      %v360 = vpop.f32.mrb[0].mxu0
      %v361 = vadd.f32 0.0, %v360
      %v362 = vpop.f32.mrb[0].mxu0
      %363 = vmatprep.mubr.bf16.mxu0 0
      %364 = vmatmul.mubr.bf16.gmra.mrb[0].mxu0 %v263
      %v365 = vpop.f32.mrb[0].mxu0
      %v366 = vadd.f32 0.0, %v365
      %v367 = vpop.f32.mrb[0].mxu0
      %v368 = vpop.f32.mrb[0].mxu0
      %v369 = vpop.f32.mrb[0].mxu0
      %370 = vdwg.mxu0
      %v371 = vld [vmem:[%s216] sm:$0xff]
      %v372 = vld [vmem:[%s216 + $0x8] sm:$0xff]
      %v373 = vld [vmem:[%s216 + $0x10] sm:$0xff]
      %v374 = vld [vmem:[%s216 + $0x18] sm:$0xff]
      %v375 = vld [vmem:[%s216 + $0x20] sm:$0x7]
      %v376 = vadd.f32 %v371, %v350
      %v377 = vadd.f32 %v372, %v353
      %v378 = vadd.f32 %v373, %v358
      %v379 = vadd.f32 %v374, %v361
      %v380 = vadd.f32 %v375, %v366
      %381 = vst [vmem:[%s216] sm:$0xff] %v376
      %382 = vst [vmem:[%s216 + $0x8] sm:$0xff] %v377
      %383 = vst [vmem:[%s216 + $0x10] sm:$0xff] %v378
      %384 = vst [vmem:[%s216 + $0x18] sm:$0xff] %v379
      %385 = vst [vmem:[%s216 + $0x20] sm:$0x7] %v380
      %p386 = scmp.lt.s32.totalorder %s19, 1
      %s387 = scalar_select %p386, %s19, 1
      %s388 = smul.addr %s387, 5
      %s389 = smul.addr %s388, 8
      %s390 = scalar_lea.vmem %s3, %s389
      // Predicated region
      $region37: #{tpu_custom_call.1} parent=31 // pred_check
        %p391 = pneg %p120
      $region38: #{tpu_custom_call.1} parent=31 // pred_check_branch
        %393 = sbr.rel (%p391) target = $region40
      $region39: #{tpu_custom_call.1} parent=31 // pred_region
        _
      $region40: #{tpu_custom_call.1} parent=31 // pred_fallthru
        _
    $region32: #{tpu_custom_call.1} parent=5 // pred_fallthru
      _
    %p394 = scmp.le.s32.totalorder 2, %s10
    // Predicated region
    $region41: #{tpu_custom_call.1} parent=5 // pred_check
      %p395 = pneg %p394
    $region42: #{tpu_custom_call.1} parent=5 // pred_check_branch
      %397 = sbr.rel (%p395) target = $region44
    $region43: #{tpu_custom_call.1} parent=5 // pred_region
      %s398 = ssub.s32 %s10, 2
      // Predicated region
      $region45: #{tpu_custom_call.1} parent=43 // pred_check
        %p399 = pneg %p126
      $region46: #{tpu_custom_call.1} parent=43 // pred_check_branch
        %401 = sbr.rel (%p399) target = $region48
      $region47: #{tpu_custom_call.1} parent=43 // pred_region
        %p402 = scmp.lt.s32.totalorder %s21, 1
        %s403 = scalar_select %p402, %s21, 1
        %s404 = smul.addr %s403, 5
        %s405 = smul.addr %s404, 8
        %s406 = scalar_lea.vmem %s3, %s405
      $region48: #{tpu_custom_call.1} parent=43 // pred_fallthru
        _
    $region44: #{tpu_custom_call.1} parent=5 // pred_fallthru
      _
  $region6: #{tpu_custom_call.1} parent=0 // loop_footer
    %s14 = sadd.s32 1, %s10
  $region7: #{tpu_custom_call.1} parent=0 // loop_footer_branch
    %9 = sbr.rel target = $region3
  $region8: #{tpu_custom_call.1} parent=0 // loop_exit
    _

</llo_original>
